<compile_context>
chip_gen: v6e
topology: v6e:2x2x1
jax: 0.10.0
libtpu: 0.0.40
codegen_flags: <defaults>
</compile_context>

<pallas_src>
import functools

import jax
import jax.numpy as jnp
from jax.experimental import pallas as pl
from jax.experimental.pallas import tpu as pltpu


_LANE = 128
_VMEM_SLACK = 2 * 2**20   # compiler scratch slack in the budget estimate


def _round_up(x, m):
    return ((x + m - 1) // m) * m


def _vmem_capacity_bytes():
    """Per-TensorCore VMEM capacity; conservative fallback if unqueryable."""
    try:
        return int(pltpu.get_tpu_info().vmem_capacity_bytes)
    except Exception:
        return 64 * 2**20   # v7x per-TC VMEM (the smallest of v5e/v6e/v7x)


def _make_single_buffered():
    """A pl.Buffered(buffer_count=1) instance, or None if unsupported."""
    try:
        return pl.Buffered(buffer_count=1)
    except TypeError:
        try:
            return pl.Buffered(1)
        except Exception:
            return None
    except Exception:
        return None


@functools.lru_cache(maxsize=1)
def _single_buffer_supported():
    """Probe once whether pipeline_mode=pl.Buffered(1) lowers + compiles.

    A tiny dummy kernel is used so genuine failures of the real kernel (e.g.
    W1 exceeding VMEM) are never masked by this check.
    """
    pm = _make_single_buffered()
    if pm is None:
        return False

    def _k(x_ref, o_ref):
        o_ref[...] = x_ref[...] * 2.0

    try:
        fn = pl.pallas_call(
            _k,
            out_shape=jax.ShapeDtypeStruct((16, _LANE), jnp.float32),
            grid=(2,),
            in_specs=[pl.BlockSpec((8, _LANE), lambda i: (0, 0),
                                   pipeline_mode=pm)],
            out_specs=pl.BlockSpec((8, _LANE), lambda i: (i, 0)),
        )
        jax.jit(fn).lower(
            jax.ShapeDtypeStruct((8, _LANE), jnp.float32)).compile()
        return True
    except Exception:
        return False


# ----------------------------------------------------------------------------
# Kernels
# ----------------------------------------------------------------------------
def _value_head_resident_kernel(x_ref, w1_ref, b1_ref, w2_ref, b2_ref, o_ref):
    """v = relu(x @ W1 + b1) . w2 + b2 with W1 fully resident in VMEM.

    x_ref  : (tm, H)      activation row tile (bf16 or f32)
    w1_ref : (H, H)       first linear weight (resident)
    b1_ref : (1, H)       first bias (f32)
    w2_ref : (1, H)       second linear weight as a row (f32)
    b2_ref : (1,) SMEM    second bias (f32 scalar)
    o_ref  : (1, 1, tm)   lane-dense per-row values (f32)
    """
    # First linear on the MXU, f32 accumulation.
    h = jnp.dot(x_ref[...], w1_ref[...], preferred_element_type=jnp.float32)
    # Bias + ReLU on the VPU, kept in f32 (v5e has no bf16 VPU/EUP).
    h = jnp.maximum(h + b1_ref[...], 0.0)
    # Second linear (H -> 1): VPU multiply + XLU lane reduction, not an N=1 MXU
    # matmul (which would waste >99% of each MXU push).
    v = jnp.sum(h * w2_ref[...], axis=-1) + b2_ref[0]
    # Lane-dense store: the tm per-row values go across the lane axis.
    o_ref[...] = v.reshape(o_ref.shape).astype(o_ref.dtype)


def _value_head_coltiled_kernel(x_ref, w1_ref, b1_ref, w2_ref, b2_ref, o_ref):
    """Column-tiled variant for W1 too large to keep resident (v7x 64 MiB).

    Grid = (row tiles, W1 column tiles). The innermost ("arbitrary") axis j
    streams column blocks of W1; the (1, 1, tm) output block is the
    accumulator:  v += relu(x @ W1[:, j] + b1[j]) . w2[j]   (+ b2 at the end).
    The ReLU is column-wise, so accumulating per column block is exact.
    """
    j = pl.program_id(1)

    @pl.when(j == 0)
    def _init():
        o_ref[...] = jnp.zeros_like(o_ref)

    h = jnp.dot(x_ref[...], w1_ref[...], preferred_element_type=jnp.float32)
    h = jnp.maximum(h + b1_ref[...], 0.0)
    o_ref[...] += jnp.sum(h * w2_ref[...], axis=-1).reshape(o_ref.shape)

    @pl.when(j == pl.num_programs(1) - 1)
    def _finalize():
        o_ref[...] += b2_ref[0]


# ----------------------------------------------------------------------------
# pallas_call builders
# ----------------------------------------------------------------------------
def _build_resident_call(num_tiles, tm, H, vmem_limit, cost, single_buffer):
    pm = _make_single_buffered() if single_buffer else None

    def resident_spec(shape):
        index_map = lambda i: (0,) * len(shape)
        if pm is not None:
            # Constant index_map => the block never changes; one VMEM copy is
            # enough (halves resident-weight VMEM footprint).
            return pl.BlockSpec(shape, index_map, pipeline_mode=pm)
        return pl.BlockSpec(shape, index_map)

    grid_spec = pltpu.PrefetchScalarGridSpec(
        num_scalar_prefetch=0,
        grid=(num_tiles,),
        in_specs=[
            pl.BlockSpec((tm, H), lambda i: (i, 0)),            # activations (default Buffered(2))
            resident_spec((H, H)),                               # W1 (resident)
            resident_spec((1, H)),                               # b1
            resident_spec((1, H)),                               # w2 row
            pl.BlockSpec(memory_space=pltpu.MemorySpace.SMEM),   # b2 scalar
        ],
        out_specs=pl.BlockSpec((1, 1, tm), lambda i: (i, 0, 0)),
    )
    return pl.pallas_call(
        _value_head_resident_kernel,
        out_shape=jax.ShapeDtypeStruct((num_tiles, 1, tm), jnp.float32),
        grid_spec=grid_spec,
        compiler_params=pltpu.CompilerParams(
            dimension_semantics=("parallel",),   # row tiles -> both v7x TCs
            vmem_limit_bytes=vmem_limit),
        cost_estimate=cost,
    )


def _build_coltiled_call(num_tiles, num_col_tiles, tm, tn, H, vmem_limit, cost):
    grid_spec = pltpu.PrefetchScalarGridSpec(
        num_scalar_prefetch=0,
        grid=(num_tiles, num_col_tiles),
        in_specs=[
            pl.BlockSpec((tm, H), lambda i, j: (i, 0)),          # x (resident over j)
            pl.BlockSpec((H, tn), lambda i, j: (0, j)),          # W1 column block
            pl.BlockSpec((1, tn), lambda i, j: (0, j)),          # b1 chunk
            pl.BlockSpec((1, tn), lambda i, j: (0, j)),          # w2 chunk
            pl.BlockSpec(memory_space=pltpu.MemorySpace.SMEM),   # b2 scalar
        ],
        out_specs=pl.BlockSpec((1, 1, tm), lambda i, j: (i, 0, 0)),  # accumulator
    )
    return pl.pallas_call(
        _value_head_coltiled_kernel,
        out_shape=jax.ShapeDtypeStruct((num_tiles, 1, tm), jnp.float32),
        grid_spec=grid_spec,
        compiler_params=pltpu.CompilerParams(
            dimension_semantics=("parallel", "arbitrary"),
            vmem_limit_bytes=vmem_limit),
        cost_estimate=cost,
    )


# ----------------------------------------------------------------------------
# Wrapper
# ----------------------------------------------------------------------------
def value_head_pallas(hidden_states, w1, b1, w2, b2, *, tm=512,
                      compute_dtype=jnp.bfloat16, column_tile=None,
                      force_column_tiling=False):
    """hidden_states (B, S, H) -> per-token values (B, S) float32.

    tm: row tile (rounded up to a multiple of 128), clamped to the problem
        size and split so the grid keeps >= 2 steps when there are enough
        rows (keeps both v7x TensorCores busy). 512 is a good v5e/v6e default.
    compute_dtype: dtype for x and W1 on the MXU (default bf16: ~2-3x matmul
        throughput, half the activation DMA and half the resident-W1 VMEM).
        Accumulation and the bias/ReLU/w2 epilogue always stay float32.
    column_tile / force_column_tiling: control the W1-streaming fallback used
        when W1 does not fit resident in the per-TensorCore VMEM budget.
    """
    B, S, H = hidden_states.shape
    M = B * S
    x = hidden_states.reshape(M, H)

    w1c = w1
    if compute_dtype is not None:
        x = x.astype(compute_dtype)
        w1c = w1.astype(compute_dtype)

    b1_row = b1.reshape(1, H).astype(jnp.float32)
    w2_row = w2.reshape(1, H).astype(jnp.float32)   # (H, 1) -> (1, H) row
    b2_s = b2.reshape(1).astype(jnp.float32)

    x_item = jnp.dtype(x.dtype).itemsize
    w_item = jnp.dtype(w1c.dtype).itemsize

    # Row tile: multiple of 128 (lane-dense output), no larger than needed,
    # and >= 2 grid steps when possible so the "parallel" grid axis can be
    # sharded across both v7x TensorCores.
    m_lanes = _round_up(M, _LANE)
    tm_eff = min(_round_up(tm, _LANE), m_lanes)
    if m_lanes // tm_eff < 2 and m_lanes >= 2 * _LANE:
        tm_eff = _round_up(m_lanes // 2, _LANE)
    num_tiles = pl.cdiv(M, tm_eff)

    # --- per-TensorCore VMEM budgeting -------------------------------------
    capacity = _vmem_capacity_bytes()
    budget = int(capacity * 0.85)             # ~15% headroom for the compiler

    single_buffer = _single_buffer_supported()
    w1_copies = 1 if single_buffer else 2
    resident_need = (
        2 * tm_eff * H * x_item            # double-buffered activation tiles
        + w1_copies * H * H * w_item       # resident W1
        + w1_copies * 2 * H * 4            # b1 + w2 rows
        + tm_eff * H * 4                   # f32 intermediate h (largest temp)
        + 2 * tm_eff * 4                   # double-buffered output rows
        + _VMEM_SLACK)

    use_resident = (not force_column_tiling) and resident_need <= budget
    if H % _LANE != 0:
        # Column tiling needs a lane-aligned H; keep W1 resident instead.
        use_resident = True

    cost = pl.CostEstimate(
        flops=2 * M * H * H + 3 * M * H,
        transcendentals=0,
        bytes_accessed=M * H * x_item + H * H * w_item + 2 * H * 4 + M * 4,
    )

    args = (x, w1c, b1_row, w2_row, b2_s)
    if use_resident:
        vmem_limit = min(budget, max(resident_need, 32 * 2**20))
        out = _build_resident_call(num_tiles, tm_eff, H, vmem_limit, cost,
                                   single_buffer)(*args)
    else:
        # W1 does not fit resident (e.g. H >= ~4K on v7x's 64 MiB per TC):
        # stream W1 column blocks and accumulate into the output block.
        if column_tile is not None:
            tn = column_tile
        else:
            tn = _LANE
            for cand in (1024, 512, 256):
                need = (2 * tm_eff * H * x_item + 2 * H * cand * w_item
                        + 4 * cand * 4 + tm_eff * cand * 4
                        + 2 * tm_eff * 4 + _VMEM_SLACK)
                if H % cand == 0 and need <= budget:
                    tn = cand
                    break
        assert H % tn == 0, "column tile must divide the (padded) hidden size"
        coltile_need = (2 * tm_eff * H * x_item + 2 * H * tn * w_item
                        + 4 * tn * 4 + tm_eff * tn * 4
                        + 2 * tm_eff * 4 + _VMEM_SLACK)
        vmem_limit = min(budget, max(coltile_need, 32 * 2**20))
        out = _build_coltiled_call(num_tiles, H // tn, tm_eff, tn, H,
                                   vmem_limit, cost)(*args)

    # (num_tiles, 1, tm) -> (M,) -> (B, S)    [Rearrange('... 1 -> ...')]
    # The ragged final tile's extra rows are undefined and sliced off here.
    return out.reshape(num_tiles * tm_eff)[:M].reshape(B, S)


# ----------------------------------------------------------------------------
# CriticModel in JAX
# ----------------------------------------------------------------------------
class CriticModelPallas:
    def __init__(self, vocab_size, hidden_size, key,
                 compute_dtype=jnp.bfloat16):
        # TODO(synk): the pretrained AutoModel transformer backbone is not
        # translated; last_hidden_state is synthesized with a deterministic
        # embedding lookup instead.
        self.H = hidden_size
        # One-time alignment of the hidden size to a lane multiple (128) so
        # every MXU push is full width; zero-padded rows/cols keep the math
        # identical to the unpadded module.
        self.H_pad = _round_up(hidden_size, _LANE)
        self.compute_dtype = compute_dtype

        k_emb, k_w1, k_b1, k_w2, k_b2 = jax.random.split(key, 5)
        emb = jax.random.normal(k_emb, (vocab_size, hidden_size),
                                dtype=jnp.float32)
        # nn.Linear default init: U(-1/sqrt(fan_in), 1/sqrt(fan_in))
        lim = 1.0 / jnp.sqrt(jnp.float32(hidden_size))
        w1 = jax.random.uniform(k_w1, (hidden_size, hidden_size),
                                minval=-lim, maxval=lim, dtype=jnp.float32)
        b1 = jax.random.uniform(k_b1, (hidden_size,),
                                minval=-lim, maxval=lim, dtype=jnp.float32)
        w2 = jax.random.uniform(k_w2, (hidden_size, 1),
                                minval=-lim, maxval=lim, dtype=jnp.float32)
        b2 = jax.random.uniform(k_b2, (1,),
                                minval=-lim, maxval=lim, dtype=jnp.float32)

        pad = self.H_pad - hidden_size
        self.embedding = jnp.pad(emb, ((0, 0), (0, pad)))
        self.w1 = jnp.pad(w1, ((0, pad), (0, pad)))
        self.b1 = jnp.pad(b1, ((0, pad),))
        self.w2 = jnp.pad(w2, ((0, pad), (0, 0)))
        self.b2 = b2

    def backbone(self, input_ids, attention_mask):
        # stand-in for self.model(...).last_hidden_state : (B, S, H_pad)
        h = jnp.take(self.embedding, input_ids, axis=0)
        return h * attention_mask[..., None].astype(h.dtype)

    def forward(self, input_ids, attention_mask):
        """Returns per-token values of shape (batch, seq)."""
        hidden = self.backbone(input_ids, attention_mask)
        return value_head_pallas(hidden, self.w1, self.b1, self.w2, self.b2,
                                 compute_dtype=self.compute_dtype)

    def get_reward(self, output_sequence, output_sequence_mask):
        value = self.forward(output_sequence, output_sequence_mask)
        return value[:, -1]


def _reference_value_head(hidden, w1, b1, w2, b2):
    h = jnp.maximum(hidden.astype(jnp.float32) @ w1 + b1, 0.0)
    v = h @ w2 + b2
    return v[..., 0]


if __name__ == "__main__":
    key = jax.random.PRNGKey(0)
    k_model, k_ids, k_h2, k_p2 = jax.random.split(key, 4)

    B, S, H, VOCAB = 2, 8, 32, 64
    model = CriticModelPallas(vocab_size=VOCAB, hidden_size=H, key=k_model)

    input_ids = jax.random.randint(k_ids, (B, S), 0, VOCAB, dtype=jnp.int32)
    attention_mask = jnp.ones((B, S), dtype=jnp.int32)

    # Default path: bf16 MXU inputs, f32 accumulation / epilogue.
    value = model.forward(input_ids, attention_mask)          # (B, S)
    reward = model.get_reward(input_ids, attention_mask)      # (B,)
    jax.block_until_ready(value)
    jax.block_until_ready(reward)

    hidden = model.backbone(input_ids, attention_mask)
    value_ref = _reference_value_head(hidden, model.w1, model.b1,
                                      model.w2, model.b2)
    assert value.shape == (B, S)
    assert reward.shape == (B,)
    # bf16 MXU inputs -> loosened tolerance (expected precision loss, not a bug)
    assert jnp.allclose(value, value_ref, atol=5e-2, rtol=5e-2)
    assert jnp.allclose(reward, value_ref[:, -1], atol=5e-2, rtol=5e-2)

    # Full-precision path -> tight tolerance.
    value_f32 = value_head_pallas(hidden, model.w1, model.b1, model.w2,
                                  model.b2, compute_dtype=None)
    jax.block_until_ready(value_f32)
    assert jnp.allclose(value_f32, value_ref, atol=1e-5, rtol=1e-5)

    # Column-tiled fallback (the large-H / v7x path), forced at a small shape
    # with two W1 column blocks so the accumulator path is exercised.
    H2 = 256
    kw = jax.random.split(k_p2, 4)
    hidden2 = jax.random.normal(k_h2, (B, S, H2), dtype=jnp.float32)
    lim2 = 1.0 / jnp.sqrt(jnp.float32(H2))
    w1_2 = jax.random.uniform(kw[0], (H2, H2), minval=-lim2, maxval=lim2,
                              dtype=jnp.float32)
    b1_2 = jax.random.uniform(kw[1], (H2,), minval=-lim2, maxval=lim2,
                              dtype=jnp.float32)
    w2_2 = jax.random.uniform(kw[2], (H2, 1), minval=-lim2, maxval=lim2,
                              dtype=jnp.float32)
    b2_2 = jax.random.uniform(kw[3], (1,), minval=-lim2, maxval=lim2,
                              dtype=jnp.float32)
    value2 = value_head_pallas(hidden2, w1_2, b1_2, w2_2, b2_2,
                               compute_dtype=None,
                               force_column_tiling=True, column_tile=128)
    jax.block_until_ready(value2)
    value2_ref = _reference_value_head(hidden2, w1_2, b1_2, w2_2, b2_2)
    assert jnp.allclose(value2, value2_ref, atol=1e-4, rtol=1e-4)

    print("KERNEL_OK")
</pallas_src>

<mosaic_0001>
module attributes {stable_mosaic.version = 11 : i64} {
  func.func @_value_head_resident_kernel(%arg0: i32, %arg1: memref<128x128xbf16, #tpu.memory_space<vmem>>, %arg2: memref<128x128xbf16, #tpu.memory_space<vmem>>, %arg3: memref<1x128xf32, #tpu.memory_space<vmem>>, %arg4: memref<1x128xf32, #tpu.memory_space<vmem>>, %arg5: memref<1xf32, #tpu.memory_space<smem>>, %arg6: memref<1x1x128xf32, #tpu.memory_space<vmem>>) attributes {dimension_semantics = [#tpu.dimension_semantics<parallel>], iteration_bounds = array<i64: 1>, scalar_prefetch = 0 : i64, scratch_operands = 0 : i64, tpu.core_type = #tpu.core_type<tc>, window_params = [{transform_indices = @transform_0, window_bounds = array<i64: 128, 128>}, {pipeline_mode = #tpu.pipeline_mode<synchronous>, transform_indices = @transform_1, window_bounds = array<i64: 128, 128>}, {pipeline_mode = #tpu.pipeline_mode<synchronous>, transform_indices = @transform_2, window_bounds = array<i64: 1, 128>}, {pipeline_mode = #tpu.pipeline_mode<synchronous>, transform_indices = @transform_3, window_bounds = array<i64: 1, 128>}, {transform_indices = @transform_4, window_bounds = array<i64: 1>}, {transform_indices = @transform_5, window_bounds = array<i64: 1, 1, 128>}]} {
    %c0 = arith.constant 0 : index
    %c0_0 = arith.constant 0 : index
    %0 = vector.load %arg1[%c0, %c0_0] : memref<128x128xbf16, #tpu.memory_space<vmem>>, vector<128x128xbf16>
    %c0_1 = arith.constant 0 : index
    %c0_2 = arith.constant 0 : index
    %1 = vector.load %arg2[%c0_1, %c0_2] : memref<128x128xbf16, #tpu.memory_space<vmem>>, vector<128x128xbf16>
    %cst = arith.constant dense<0.000000e+00> : vector<128x128xf32>
    %2 = tpu.matmul %0, %1, %cst {dimension_numbers = #tpu.dot_dimension_numbers<[1], [0], [0], [1], [0, 0, 1, 1], [], []>} : vector<128x128xbf16>, vector<128x128xbf16>, vector<128x128xf32> -> vector<128x128xf32>
    %c0_3 = arith.constant 0 : index
    %c0_4 = arith.constant 0 : index
    %3 = vector.load %arg3[%c0_3, %c0_4] : memref<1x128xf32, #tpu.memory_space<vmem>>, vector<1x128xf32>
    %4 = vector.broadcast %3 : vector<1x128xf32> to vector<128x128xf32>
    %5 = arith.addf %2, %4 : vector<128x128xf32>
    %cst_5 = arith.constant 0.000000e+00 : f32
    %6 = vector.broadcast %cst_5 : f32 to vector<128x128xf32>
    %7 = arith.maximumf %5, %6 : vector<128x128xf32>
    %c0_6 = arith.constant 0 : index
    %c0_7 = arith.constant 0 : index
    %8 = vector.load %arg4[%c0_6, %c0_7] : memref<1x128xf32, #tpu.memory_space<vmem>>, vector<1x128xf32>
    %9 = vector.broadcast %8 : vector<1x128xf32> to vector<128x128xf32>
    %10 = arith.mulf %7, %9 : vector<128x128xf32>
    %cst_8 = arith.constant dense<0.000000e+00> : vector<128xf32>
    %11 = vector.multi_reduction <add>, %10, %cst_8 [1] : vector<128x128xf32> to vector<128xf32>
    %c0_9 = arith.constant 0 : index
    %12 = memref.load %arg5[%c0_9] : memref<1xf32, #tpu.memory_space<smem>>
    %13 = vector.broadcast %12 : f32 to vector<128xf32>
    %14 = arith.addf %11, %13 : vector<128xf32>
    %15 = vector.shape_cast %14 : vector<128xf32> to vector<1x1x128xf32>
    %c0_10 = arith.constant 0 : index
    %c0_11 = arith.constant 0 : index
    %c0_12 = arith.constant 0 : index
    %16 = vector.load %arg6[%c0_10, %c0_11, %c0_12] : memref<1x1x128xf32, #tpu.memory_space<vmem>>, vector<1x1x128xf32>
    tpu.vector_store %arg6[%c0_10, %c0_11, %c0_12], %15 {strides = array<i32>} : memref<1x1x128xf32, #tpu.memory_space<vmem>>, vector<1x1x128xf32>,
    return
  }
  func.func @transform_0(%arg0: i32) -> (i32, i32) {
    %c0_i32 = arith.constant 0 : i32
    %c0_i32_0 = arith.constant 0 : i32
    return %arg0, %c0_i32 : i32, i32
  }
  func.func @transform_1(%arg0: i32) -> (i32, i32) {
    %c0_i32 = arith.constant 0 : i32
    %c0_i32_0 = arith.constant 0 : i32
    %c0_i32_1 = arith.constant 0 : i32
    return %c0_i32, %c0_i32_0 : i32, i32
  }
  func.func @transform_2(%arg0: i32) -> (i32, i32) {
    %c0_i32 = arith.constant 0 : i32
    %c0_i32_0 = arith.constant 0 : i32
    %c0_i32_1 = arith.constant 0 : i32
    return %c0_i32, %c0_i32_0 : i32, i32
  }
  func.func @transform_3(%arg0: i32) -> (i32, i32) {
    %c0_i32 = arith.constant 0 : i32
    %c0_i32_0 = arith.constant 0 : i32
    %c0_i32_1 = arith.constant 0 : i32
    return %c0_i32, %c0_i32_0 : i32, i32
  }
  func.func @transform_4(%arg0: i32) -> i32 {
    %c0_i32 = arith.constant 0 : i32
    %c0_i32_0 = arith.constant 0 : i32
    return %c0_i32 : i32
  }
  func.func @transform_5(%arg0: i32) -> (i32, i32, i32) {
    %c0_i32 = arith.constant 0 : i32
    %c0_i32_0 = arith.constant 0 : i32
    %c0_i32_1 = arith.constant 0 : i32
    return %arg0, %c0_i32, %c0_i32_0 : i32, i32, i32
  }
}

</mosaic_0001>

<llo_original>
// kernel: tpu_custom_call.1
$region0: #{tpu_custom_call.1}
  #allocation0 [shape = 'u32[]', space=smem, size = 0x4, offset = 0x4, fixed_abs, tag = 'smem constant byte address 0x4 - core index']
  #allocation1 [shape = 'u32[144,128]{1,0:T(1,128)}', space=vmem, size = 0x12000, scoped, tag = 'internal scratch']
  #allocation2 [shape = 'f32[1]{0:T(128)S(6)}', space=smem, size = 0x200, scoped, tag = 'scoped memory for tpu_custom_call.1']
  %s0 = inlined_call_operand.hbm [shape: bf16[16,128], index: 0, kind: input, shape index: {}]
  %s1 = inlined_call_operand.hbm [shape: bf16[128,128], index: 1, kind: input, shape index: {}]
  %s2 = inlined_call_operand.vmem [shape: f32[1,128], index: 2, kind: input, shape index: {}]
  %s3 = inlined_call_operand.vmem [shape: f32[1,128], index: 3, kind: input, shape index: {}]
  %s4 = inlined_call_operand.<no memory space> [shape: f32[1], index: 4, kind: input, shape index: {}]
  %s5 = inlined_call_operand.hbm [shape: f32[1,1,128], index: 5, kind: output, shape index: {}]
  %s6 = sld [smem:[#allocation0]]
  $region38: #{tpu_custom_call.1} parent=0
    _
  %s8 = ssub.s32 1, %s6
  %s9 = scalar_select 0, %s8, %s6
  %10 = sst [smem:[#allocation2]] %s4
  $region1: #{tpu_custom_call.1} parent=0
    #allocation3 [shape = 'u8[32768]{0}', space=vmem, size = 0x8000, scoped, tag = 'input window, operand 0, single buffered']
    #allocation4 [shape = 's32[1]{0}', space=sflag, size = 0x4, scoped, tag = 'scoped memory for tpu_custom_call.1']
    #allocation5 [shape = 's32[1]{0}', space=sflag, size = 0x4, scoped, tag = 'scoped memory for tpu_custom_call.1']
    #allocation6 [shape = 'u8[32768]{0}', space=vmem, size = 0x8000, scoped, tag = 'input window, operand 1, single buffered']
    #allocation7 [shape = 's32[1]{0}', space=sflag, size = 0x4, scoped, tag = 'scoped memory for tpu_custom_call.1']
    #allocation8 [shape = 'u8[512]{0}', space=vmem, size = 0x400, scoped, tag = 'output window, operand 0, single buffered']
    %11 = vsyncpa [#allocation4], 0
    %12 = vsyncpa [#allocation7], 0
    %13 = vsyncpa [#allocation5], 0
    // Predicated region
    $region2: #{tpu_custom_call.1} parent=1 // pred_check
      _
    $region3: #{tpu_custom_call.1} parent=1 // pred_check_branch
      %15 = sbr.rel (0) target = $region5
    $region4: #{tpu_custom_call.1} parent=1 // pred_region
      %s17 = ssub.s32 1024, 128
      %18 = vsyncadd [#allocation4], %s17
      %s19 = sshll.u32 [#allocation3], 4
      %s20 = int_to_ptr.vmem [resolvable:$true] %s19
      %25 = dma.hbm_to_vmem [thread:$0]  %s0, 128, %s20, [#allocation4], 64, 64, 4
    $region5: #{tpu_custom_call.1} parent=1 // pred_fallthru
      _
    // Predicated region
    $region6: #{tpu_custom_call.1} parent=1 // pred_check
      _
    $region7: #{tpu_custom_call.1} parent=1 // pred_check_branch
      %27 = sbr.rel (0) target = $region9
    $region8: #{tpu_custom_call.1} parent=1 // pred_region
      %s29 = ssub.s32 1024, 1024
      %30 = vsyncadd [#allocation7], %s29
      %s31 = sshll.u32 [#allocation6], 4
      %s32 = int_to_ptr.vmem [resolvable:$true] %s31
      %37 = dma.hbm_to_vmem [thread:$0]  %s1, 1024, %s32, [#allocation7], 64, 64, 4
    $region9: #{tpu_custom_call.1} parent=1 // pred_fallthru
      _
    // Predicated region
    $region10: #{tpu_custom_call.1} parent=1 // pred_check
      _
    $region11: #{tpu_custom_call.1} parent=1 // pred_check_branch
      %39 = sbr.rel (0) target = $region13
    $region12: #{tpu_custom_call.1} parent=1 // pred_region
      _
    $region13: #{tpu_custom_call.1} parent=1 // pred_fallthru
      _
    // Predicated region
    $region14: #{tpu_custom_call.1} parent=1 // pred_check
      _
    $region15: #{tpu_custom_call.1} parent=1 // pred_check_branch
      %41 = sbr.rel (0) target = $region17
    $region16: #{tpu_custom_call.1} parent=1 // pred_region
      _
    $region17: #{tpu_custom_call.1} parent=1 // pred_fallthru
      _
    // Predicated region
    $region18: #{tpu_custom_call.1} parent=1 // pred_check
      _
    $region19: #{tpu_custom_call.1} parent=1 // pred_check_branch
      %43 = sbr.rel (0) target = $region21
    $region20: #{tpu_custom_call.1} parent=1 // pred_region
      _
    $region21: #{tpu_custom_call.1} parent=1 // pred_fallthru
      _
    // Predicated region
    $region22: #{tpu_custom_call.1} parent=1 // pred_check
      _
    $region23: #{tpu_custom_call.1} parent=1 // pred_check_branch
      %45 = sbr.rel (0) target = $region25
    $region24: #{tpu_custom_call.1} parent=1 // pred_region
      %46 = dma.done [#allocation4], 1024
    $region25: #{tpu_custom_call.1} parent=1 // pred_fallthru
      _
    // Predicated region
    $region26: #{tpu_custom_call.1} parent=1 // pred_check
      _
    $region27: #{tpu_custom_call.1} parent=1 // pred_check_branch
      %48 = sbr.rel (0) target = $region29
    $region28: #{tpu_custom_call.1} parent=1 // pred_region
      %49 = dma.done [#allocation7], 1024
    $region29: #{tpu_custom_call.1} parent=1 // pred_fallthru
      _
    %v51 = vld [vmem:[#allocation3] sm:$0xf]
    %v52 = vld [vmem:[#allocation3 + $0x4] sm:$0xf]
    %v53 = vld [vmem:[#allocation3 + $0x8] sm:$0xf]
    %v54 = vld [vmem:[#allocation3 + $0xc] sm:$0xf]
    %v55 = vld [vmem:[#allocation3 + $0x10] sm:$0xf]
    %v56 = vld [vmem:[#allocation3 + $0x14] sm:$0xf]
    %v57 = vld [vmem:[#allocation3 + $0x18] sm:$0xf]
    %v58 = vld [vmem:[#allocation3 + $0x1c] sm:$0xf]
    %v59 = vld [vmem:[#allocation3 + $0x20] sm:$0xf]
    %v60 = vld [vmem:[#allocation3 + $0x24] sm:$0xf]
    %v61 = vld [vmem:[#allocation3 + $0x28] sm:$0xf]
    %v62 = vld [vmem:[#allocation3 + $0x2c] sm:$0xf]
    %v63 = vld [vmem:[#allocation3 + $0x30] sm:$0xf]
    %v64 = vld [vmem:[#allocation3 + $0x34] sm:$0xf]
    %v65 = vld [vmem:[#allocation3 + $0x38] sm:$0xf]
    %v66 = vld [vmem:[#allocation3 + $0x3c] sm:$0xf]
    %v67 = vld [vmem:[#allocation6] sm:$0xf]
    %v68 = vld [vmem:[#allocation6 + $0x4] sm:$0xf]
    %v69 = vld [vmem:[#allocation6 + $0x8] sm:$0xf]
    %v70 = vld [vmem:[#allocation6 + $0xc] sm:$0xf]
    %v71 = vld [vmem:[#allocation6 + $0x10] sm:$0xf]
    %v72 = vld [vmem:[#allocation6 + $0x14] sm:$0xf]
    %v73 = vld [vmem:[#allocation6 + $0x18] sm:$0xf]
    %v74 = vld [vmem:[#allocation6 + $0x1c] sm:$0xf]
    %v75 = vld [vmem:[#allocation6 + $0x20] sm:$0xf]
    %v76 = vld [vmem:[#allocation6 + $0x24] sm:$0xf]
    %v77 = vld [vmem:[#allocation6 + $0x28] sm:$0xf]
    %v78 = vld [vmem:[#allocation6 + $0x2c] sm:$0xf]
    %v79 = vld [vmem:[#allocation6 + $0x30] sm:$0xf]
    %v80 = vld [vmem:[#allocation6 + $0x34] sm:$0xf]
    %v81 = vld [vmem:[#allocation6 + $0x38] sm:$0xf]
    %v82 = vld [vmem:[#allocation6 + $0x3c] sm:$0xf]
    %v83 = vld [vmem:[%s2] sm:$0x1]
    %v85 = vlaneseq
    %v86 = vshrl.u32 %v85, 7
    %v87 = vsub.s32 0, %v86
    %v88 = vrot.slane %v83, %v87
    %v106 = vunpack.c.l.b16 %v51
    %v107 = vunpack.c.l.b16 %v52
    %v108 = vunpack.c.l.b16 %v53
    %v109 = vunpack.c.l.b16 %v54
    %v110 = vunpack.c.l.b16 %v55
    %v111 = vunpack.c.l.b16 %v56
    %v112 = vunpack.c.l.b16 %v57
    %v113 = vunpack.c.l.b16 %v58
    %v114 = vunpack.c.l.b16 %v59
    %v115 = vunpack.c.l.b16 %v60
    %v116 = vunpack.c.l.b16 %v61
    %v117 = vunpack.c.l.b16 %v62
    %v118 = vunpack.c.l.b16 %v63
    %v119 = vunpack.c.l.b16 %v64
    %v120 = vunpack.c.l.b16 %v65
    %v121 = vunpack.c.l.b16 %v66
    %v122 = vpack.c.b16 %v107, %v106
    %v123 = vpack.c.b16 %v109, %v108
    %v124 = vpack.c.b16 %v111, %v110
    %v125 = vpack.c.b16 %v113, %v112
    %v126 = vpack.c.b16 %v115, %v114
    %v127 = vpack.c.b16 %v117, %v116
    %v128 = vpack.c.b16 %v119, %v118
    %v129 = vpack.c.b16 %v121, %v120
    %v154 = vunpack.c.l.b16 %v67
    %v155 = vunpack.c.l.b16 %v68
    %v156 = vunpack.c.l.b16 %v69
    %v157 = vunpack.c.l.b16 %v70
    %v158 = vunpack.c.l.b16 %v71
    %v159 = vunpack.c.l.b16 %v72
    %v160 = vunpack.c.l.b16 %v73
    %v161 = vunpack.c.l.b16 %v74
    %v162 = vunpack.c.l.b16 %v75
    %v163 = vunpack.c.l.b16 %v76
    %v164 = vunpack.c.l.b16 %v77
    %v165 = vunpack.c.l.b16 %v78
    %v166 = vunpack.c.l.b16 %v79
    %v167 = vunpack.c.l.b16 %v80
    %v168 = vunpack.c.l.b16 %v81
    %v169 = vunpack.c.l.b16 %v82
    %v170 = vpack.c.b16 %v155, %v154
    %v171 = vpack.c.b16 %v157, %v156
    %v172 = vpack.c.b16 %v159, %v158
    %v173 = vpack.c.b16 %v161, %v160
    %v174 = vpack.c.b16 %v163, %v162
    %v175 = vpack.c.b16 %v165, %v164
    %v176 = vpack.c.b16 %v167, %v166
    %v177 = vpack.c.b16 %v169, %v168
    %186 = vmatprep.subr.bf16.mxu0 0
    %187 = vmatpush1.bf16.msra.mxu0 %v177
    %188 = vmatprep.subr.bf16.mxu0 0
    %189 = vmatpush1.bf16.msra.mxu0 %v176
    %190 = vmatprep.subr.bf16.mxu0 0
    %191 = vmatpush1.bf16.msra.mxu0 %v175
    %192 = vmatprep.subr.bf16.mxu0 0
    %193 = vmatpush1.bf16.msra.mxu0 %v174
    %194 = vmatprep.subr.bf16.mxu0 0
    %195 = vmatpush1.bf16.msra.mxu0 %v173
    %196 = vmatprep.subr.bf16.mxu0 0
    %197 = vmatpush1.bf16.msra.mxu0 %v172
    %198 = vmatprep.subr.bf16.mxu0 0
    %199 = vmatpush1.bf16.msra.mxu0 %v171
    %200 = vmatprep.subr.bf16.mxu0 0
    %201 = vmatpush1.bf16.msra.mxu0 %v170
    %202 = vmatprep.subr.bf16.mxu0 0
    %203 = vmatpush2.bf16.msra.mxu0 0
    %204 = vmatprep.subr.bf16.mxu0 0
    %205 = vmatpush2.bf16.msra.mxu0 0
    %206 = vmatprep.subr.bf16.mxu0 0
    %207 = vmatpush2.bf16.msra.mxu0 0
    %208 = vmatprep.subr.bf16.mxu0 0
    %209 = vmatpush2.bf16.msra.mxu0 0
    %210 = vmatprep.subr.bf16.mxu0 0
    %211 = vmatpush2.bf16.msra.mxu0 0
    %212 = vmatprep.subr.bf16.mxu0 0
    %213 = vmatpush2.bf16.msra.mxu0 0
    %214 = vmatprep.subr.bf16.mxu0 0
    %215 = vmatpush2.bf16.msra.mxu0 0
    %216 = vmatprep.subr.bf16.mxu0 0
    %217 = vmatpush2.bf16.msra.mxu0 0
    %218 = vmatprep.mubr.bf16.mxu0 0
    %219 = vmatmul.mubr.bf16.gmra.mxu0 %v122
    %v220 = vpop.f32.mrf.mxu0
    %v221 = vadd.f32 %v88, %v220
    %v222 = vpop.f32.mrf.mxu0
    %v223 = vpop.f32.mrf.mxu0
    %v224 = vadd.f32 %v88, %v223
    %v225 = vpop.f32.mrf.mxu0
    %226 = vmatprep.mubr.bf16.mxu0 0
    %227 = vmatmul.mubr.bf16.gmra.mxu0 %v123
    %v228 = vpop.f32.mrf.mxu0
    %v229 = vadd.f32 %v88, %v228
    %v230 = vpop.f32.mrf.mxu0
    %v231 = vpop.f32.mrf.mxu0
    %v232 = vadd.f32 %v88, %v231
    %v233 = vpop.f32.mrf.mxu0
    %234 = vmatprep.mubr.bf16.mxu0 0
    %235 = vmatmul.mubr.bf16.gmra.mxu0 %v124
    %v236 = vpop.f32.mrf.mxu0
    %v237 = vadd.f32 %v88, %v236
    %v238 = vpop.f32.mrf.mxu0
    %v239 = vpop.f32.mrf.mxu0
    %v240 = vadd.f32 %v88, %v239
    %v241 = vpop.f32.mrf.mxu0
    %242 = vmatprep.mubr.bf16.mxu0 0
    %243 = vmatmul.mubr.bf16.gmra.mxu0 %v125
    %v244 = vpop.f32.mrf.mxu0
    %v245 = vadd.f32 %v88, %v244
    %v246 = vpop.f32.mrf.mxu0
    %v247 = vpop.f32.mrf.mxu0
    %v248 = vadd.f32 %v88, %v247
    %v249 = vpop.f32.mrf.mxu0
    %250 = vmatprep.mubr.bf16.mxu0 0
    %251 = vmatmul.mubr.bf16.gmra.mxu0 %v126
    %v252 = vpop.f32.mrf.mxu0
    %v253 = vadd.f32 %v88, %v252
    %v254 = vpop.f32.mrf.mxu0
    %v255 = vpop.f32.mrf.mxu0
    %v256 = vadd.f32 %v88, %v255
    %v257 = vpop.f32.mrf.mxu0
    %258 = vmatprep.mubr.bf16.mxu0 0
    %259 = vmatmul.mubr.bf16.gmra.mxu0 %v127
    %v260 = vpop.f32.mrf.mxu0
    %v261 = vadd.f32 %v88, %v260
    %v262 = vpop.f32.mrf.mxu0
    %v263 = vpop.f32.mrf.mxu0
    %v264 = vadd.f32 %v88, %v263
    %v265 = vpop.f32.mrf.mxu0
    %266 = vmatprep.mubr.bf16.mxu0 0
    %267 = vmatmul.mubr.bf16.gmra.mxu0 %v128
    %v268 = vpop.f32.mrf.mxu0
    %v269 = vadd.f32 %v88, %v268
    %v270 = vpop.f32.mrf.mxu0
    %v271 = vpop.f32.mrf.mxu0
    %v272 = vadd.f32 %v88, %v271
    %v273 = vpop.f32.mrf.mxu0
    %274 = vmatprep.mubr.bf16.mxu0 0
    %275 = vmatmul.mubr.bf16.gmra.mxu0 %v129
    %v276 = vpop.f32.mrf.mxu0
    %v277 = vadd.f32 %v88, %v276
    %v278 = vpop.f32.mrf.mxu0
    %v279 = vpop.f32.mrf.mxu0
    %v280 = vadd.f32 %v88, %v279
    %v281 = vpop.f32.mrf.mxu0
    %282 = vdwg.mxu0
    %v283 = vmax.f32 %v221, 0.0
    %v284 = vmax.f32 %v224, 0.0
    %v285 = vmax.f32 %v229, 0.0
    %v286 = vmax.f32 %v232, 0.0
    %v287 = vmax.f32 %v237, 0.0
    %v288 = vmax.f32 %v240, 0.0
    %v289 = vmax.f32 %v245, 0.0
    %v290 = vmax.f32 %v248, 0.0
    %v291 = vmax.f32 %v253, 0.0
    %v292 = vmax.f32 %v256, 0.0
    %v293 = vmax.f32 %v261, 0.0
    %v294 = vmax.f32 %v264, 0.0
    %v295 = vmax.f32 %v269, 0.0
    %v296 = vmax.f32 %v272, 0.0
    %v297 = vmax.f32 %v277, 0.0
    %v298 = vmax.f32 %v280, 0.0
    %v299 = vld [vmem:[%s3] sm:$0x1]
    %v301 = vlaneseq
    %v302 = vshrl.u32 %v301, 7
    %v303 = vsub.s32 0, %v302
    %v304 = vrot.slane %v299, %v303
    %v306 = vmul.f32 %v283, %v304
    %v307 = vmul.f32 %v284, %v304
    %v308 = vmul.f32 %v285, %v304
    %v309 = vmul.f32 %v286, %v304
    %v310 = vmul.f32 %v287, %v304
    %v311 = vmul.f32 %v288, %v304
    %v312 = vmul.f32 %v289, %v304
    %v313 = vmul.f32 %v290, %v304
    %v314 = vmul.f32 %v291, %v304
    %v315 = vmul.f32 %v292, %v304
    %v316 = vmul.f32 %v293, %v304
    %v317 = vmul.f32 %v294, %v304
    %v318 = vmul.f32 %v295, %v304
    %v319 = vmul.f32 %v296, %v304
    %v320 = vmul.f32 %v297, %v304
    %v321 = vmul.f32 %v298, %v304
    %322 = vadd.xlane.f32.xlu0 %v306
    %v323 = vpop.xlane.xlu0 %322
    %324 = vadd.xlane.f32.xlu0 %v307
    %v325 = vpop.xlane.xlu0 %324
    %326 = vadd.xlane.f32.xlu0 %v308
    %v327 = vpop.xlane.xlu0 %326
    %328 = vadd.xlane.f32.xlu0 %v309
    %v329 = vpop.xlane.xlu0 %328
    %330 = vadd.xlane.f32.xlu0 %v310
    %v331 = vpop.xlane.xlu0 %330
    %332 = vadd.xlane.f32.xlu0 %v311
    %v333 = vpop.xlane.xlu0 %332
    %334 = vadd.xlane.f32.xlu0 %v312
    %v335 = vpop.xlane.xlu0 %334
    %336 = vadd.xlane.f32.xlu0 %v313
    %v337 = vpop.xlane.xlu0 %336
    %338 = vadd.xlane.f32.xlu0 %v314
    %v339 = vpop.xlane.xlu0 %338
    %340 = vadd.xlane.f32.xlu0 %v315
    %v341 = vpop.xlane.xlu0 %340
    %342 = vadd.xlane.f32.xlu0 %v316
    %v343 = vpop.xlane.xlu0 %342
    %344 = vadd.xlane.f32.xlu0 %v317
    %v345 = vpop.xlane.xlu0 %344
    %346 = vadd.xlane.f32.xlu0 %v318
    %v347 = vpop.xlane.xlu0 %346
    %348 = vadd.xlane.f32.xlu0 %v319
    %v349 = vpop.xlane.xlu0 %348
    %350 = vadd.xlane.f32.xlu0 %v320
    %v351 = vpop.xlane.xlu0 %350
    %352 = vadd.xlane.f32.xlu0 %v321
    %v353 = vpop.xlane.xlu0 %352
    %s354 = sld [smem:[#allocation2]]
    %v355 = vstv %s354
    %v356 = vadd.f32 %v323, %v355
    %v357 = vadd.f32 %v325, %v355
    %v358 = vadd.f32 %v327, %v355
    %v359 = vadd.f32 %v329, %v355
    %v360 = vadd.f32 %v331, %v355
    %v361 = vadd.f32 %v333, %v355
    %v362 = vadd.f32 %v335, %v355
    %v363 = vadd.f32 %v337, %v355
    %v364 = vadd.f32 %v339, %v355
    %v365 = vadd.f32 %v341, %v355
    %v366 = vadd.f32 %v343, %v355
    %v367 = vadd.f32 %v345, %v355
    %v368 = vadd.f32 %v347, %v355
    %v369 = vadd.f32 %v349, %v355
    %v370 = vadd.f32 %v351, %v355
    %v371 = vadd.f32 %v353, %v355
    %v388 = vlaneseq
    %v389 = vand.u32 %v388, 127
    %v390 = vlaneseq
    %v391 = vshrl.u32 %v390, 7
    %v392 = vsub.s32 %v389, %v391
    %v393 = vrot.slane %v356, %v392
    %v394 = vadd.s32 %v389, 4294967288
    %v395 = vlaneseq
    %v396 = vshrl.u32 %v395, 7
    %v397 = vsub.s32 %v394, %v396
    %v398 = vrot.slane %v357, %v397
    %vm399 = vcmask 130112
    %v400 = vsel %vm399, %v398, %v393
    %v401 = vadd.s32 %v389, 4294967280
    %v402 = vlaneseq
    %v403 = vshrl.u32 %v402, 7
    %v404 = vsub.s32 %v401, %v403
    %v405 = vrot.slane %v358, %v404
    %vm406 = vcmask 195712
    %v407 = vsel %vm406, %v405, %v400
    %v408 = vadd.s32 %v389, 4294967272
    %v409 = vlaneseq
    %v410 = vshrl.u32 %v409, 7
    %v411 = vsub.s32 %v408, %v410
    %v412 = vrot.slane %v359, %v411
    %vm413 = vcmask 261312
    %v414 = vsel %vm413, %v412, %v407
    %v415 = vadd.s32 %v389, 4294967264
    %v416 = vlaneseq
    %v417 = vshrl.u32 %v416, 7
    %v418 = vsub.s32 %v415, %v417
    %v419 = vrot.slane %v360, %v418
    %vm420 = vcmask 326912
    %v421 = vsel %vm420, %v419, %v414
    %v422 = vadd.s32 %v389, 4294967256
    %v423 = vlaneseq
    %v424 = vshrl.u32 %v423, 7
    %v425 = vsub.s32 %v422, %v424
    %v426 = vrot.slane %v361, %v425
    %vm427 = vcmask 392512
    %v428 = vsel %vm427, %v426, %v421
    %v429 = vadd.s32 %v389, 4294967248
    %v430 = vlaneseq
    %v431 = vshrl.u32 %v430, 7
    %v432 = vsub.s32 %v429, %v431
    %v433 = vrot.slane %v362, %v432
    %vm434 = vcmask 458112
    %v435 = vsel %vm434, %v433, %v428
    %v436 = vadd.s32 %v389, 4294967240
    %v437 = vlaneseq
    %v438 = vshrl.u32 %v437, 7
    %v439 = vsub.s32 %v436, %v438
    %v440 = vrot.slane %v363, %v439
    %vm441 = vcmask 523712
    %v442 = vsel %vm441, %v440, %v435
    %v443 = vadd.s32 %v389, 4294967232
    %v444 = vlaneseq
    %v445 = vshrl.u32 %v444, 7
    %v446 = vsub.s32 %v443, %v445
    %v447 = vrot.slane %v364, %v446
    %vm448 = vcmask 589312
    %v449 = vsel %vm448, %v447, %v442
    %v450 = vadd.s32 %v389, 4294967224
    %v451 = vlaneseq
    %v452 = vshrl.u32 %v451, 7
    %v453 = vsub.s32 %v450, %v452
    %v454 = vrot.slane %v365, %v453
    %vm455 = vcmask 654912
    %v456 = vsel %vm455, %v454, %v449
    %v457 = vadd.s32 %v389, 4294967216
    %v458 = vlaneseq
    %v459 = vshrl.u32 %v458, 7
    %v460 = vsub.s32 %v457, %v459
    %v461 = vrot.slane %v366, %v460
    %vm462 = vcmask 720512
    %v463 = vsel %vm462, %v461, %v456
    %v464 = vadd.s32 %v389, 4294967208
    %v465 = vlaneseq
    %v466 = vshrl.u32 %v465, 7
    %v467 = vsub.s32 %v464, %v466
    %v468 = vrot.slane %v367, %v467
    %vm469 = vcmask 786112
    %v470 = vsel %vm469, %v468, %v463
    %v471 = vadd.s32 %v389, 4294967200
    %v472 = vlaneseq
    %v473 = vshrl.u32 %v472, 7
    %v474 = vsub.s32 %v471, %v473
    %v475 = vrot.slane %v368, %v474
    %vm476 = vcmask 851712
    %v477 = vsel %vm476, %v475, %v470
    %v478 = vadd.s32 %v389, 4294967192
    %v479 = vlaneseq
    %v480 = vshrl.u32 %v479, 7
    %v481 = vsub.s32 %v478, %v480
    %v482 = vrot.slane %v369, %v481
    %vm483 = vcmask 917312
    %v484 = vsel %vm483, %v482, %v477
    %v485 = vadd.s32 %v389, 4294967184
    %v486 = vlaneseq
    %v487 = vshrl.u32 %v486, 7
    %v488 = vsub.s32 %v485, %v487
    %v489 = vrot.slane %v370, %v488
    %vm490 = vcmask 982912
    %v491 = vsel %vm490, %v489, %v484
    %v492 = vadd.s32 %v389, 4294967176
    %v493 = vlaneseq
    %v494 = vshrl.u32 %v493, 7
    %v495 = vsub.s32 %v492, %v494
    %v496 = vrot.slane %v371, %v495
    %vm497 = vcmask 1048512
    %v498 = vsel %vm497, %v496, %v491
    %500 = vst [vmem:[#allocation8] sm:$0x1] %v498
    // Predicated region
    $region30: #{tpu_custom_call.1} parent=1 // pred_check
      _
    $region31: #{tpu_custom_call.1} parent=1 // pred_check_branch
      %502 = sbr.rel (0) target = $region33
    $region32: #{tpu_custom_call.1} parent=1 // pred_region
      %s504 = ssub.s32 16, 16
      %505 = vsyncadd [#allocation5], %s504
      %s507 = sshll.u32 [#allocation8], 4
      %s508 = int_to_ptr.vmem [resolvable:$true] %s507
      %510 = dma.vmem_to_hbm [thread:$0]  %s508, 16, %s5, [#allocation5]
    $region33: #{tpu_custom_call.1} parent=1 // pred_fallthru
      _
    // Predicated region
    $region34: #{tpu_custom_call.1} parent=1 // pred_check
      _
    $region35: #{tpu_custom_call.1} parent=1 // pred_check_branch
      %512 = sbr.rel (0) target = $region37
    $region36: #{tpu_custom_call.1} parent=1 // pred_region
      %513 = dma.done [#allocation5], 16
    $region37: #{tpu_custom_call.1} parent=1 // pred_fallthru
      _
    %514 = vsyncpa [#allocation4], 1
    %515 = vsyncpa [#allocation7], 1
    %516 = vsyncpa [#allocation5], 1

</llo_original>
